<compile_context>
chip_gen: v6e
topology: v6e:2x2x1
jax: 0.10.0
libtpu: 0.0.40
codegen_flags: <defaults>
</compile_context>

<pallas_src>
import functools
import math

import jax
import jax.numpy as jnp
from jax.experimental import pallas as pl
from jax.experimental.pallas import tpu as pltpu


_LANES = 128
_TARGET_BLOCK_BYTES = 4 << 20   # ~4 MiB per input block (double-buffered: 8 MiB VMEM)
_MIN_PALLAS_BYTES = 1 << 20     # below this, plain XLA (fusable) beats a Pallas pass


# -----------------------------------------------------------------------------
# Pallas kernel: per-sample quadratic cost  0.5 * mean(dx_flat ** 2, axis=-1)
# -----------------------------------------------------------------------------
def _quadratic_cost_kernel(half_inv_d, d, td, ragged, x_ref, o_ref, acc_ref):
    """Accumulate per-row sum-of-squares of a (tb, td) block into a lane-dense
    (tb, 128) f32 scratch; cross-lane reduce only on the last reduction step."""
    k = pl.program_id(1)

    @pl.when(k == 0)
    def _init():
        acc_ref[...] = jnp.zeros_like(acc_ref)

    tb = x_ref.shape[0]
    n_chunks = td // _LANES
    if ragged:
        # Mask feature positions >= true D (tail block may extend past the array;
        # OOB VMEM contents are undefined, and zeros are exact for a sum of squares).
        lane = jax.lax.broadcasted_iota(jnp.int32, (tb, _LANES), 1)
        base = k * td

    s = acc_ref[...]
    for c in range(n_chunks):
        # Tile-aligned static lane slices; compute in f32 (v5e has no bf16 VALU,
        # and the kernel is mem-bound so the cast is free).
        xc = x_ref[:, c * _LANES:(c + 1) * _LANES].astype(jnp.float32)
        if ragged:
            xc = jnp.where(base + (c * _LANES) + lane < d, xc, 0.0)
        s = s + xc * xc
    acc_ref[...] = s

    @pl.when(k == pl.num_programs(1) - 1)
    def _finalize():
        o_ref[...] = (jnp.sum(acc_ref[...], axis=-1, keepdims=True)
                      * half_inv_d).astype(o_ref.dtype)


def _pick_batch_tile(b, itemsize):
    """Batch tile: a multiple of 8 (prefer 16 for 2-byte dtypes — bf16 vreg packs
    (16,128)) dividing B, preferring >= 2 batch blocks so v7x's second TensorCore
    gets work along the 'parallel' axis."""
    if b % 8 != 0:
        return b  # full-dim block bypasses the (8,128) rule
    pref = 16 if (itemsize <= 2 and b % 16 == 0) else 8
    for cand in (512, 256, 128, 64, 32, 16, 8):
        if cand % pref == 0 and b % cand == 0 and b // cand >= 2:
            return cand
    return b      # B too small to split across cores; single batch block


def _pick_feature_tile(d, tb, itemsize):
    """Feature (reduction) tile: a multiple of 128 lanes targeting ~4 MiB blocks.
    It does NOT need to divide D — the ragged tail block is masked in-kernel."""
    d_pad = ((d + _LANES - 1) // _LANES) * _LANES
    max_lanes = max(_LANES,
                    (_TARGET_BLOCK_BYTES // max(1, tb * itemsize)) // _LANES * _LANES)
    return int(min(d_pad, max_lanes))


def quadratic_cost_pallas(dx, *, min_pallas_bytes=_MIN_PALLAS_BYTES):
    """Pallas equivalent of quadratic_cost: 0.5 * dx.reshape(B,-1).pow(2).mean(-1)."""
    b = dx.shape[0]
    d = int(math.prod(dx.shape[1:]))
    out_dtype = dx.dtype
    dx2 = dx.reshape(b, d)
    itemsize = jnp.dtype(dx2.dtype).itemsize

    if b * d * itemsize < min_pallas_bytes:
        # Tiny input: fixed pallas_call overhead + a dedicated HBM pass would
        # dominate; let XLA fuse the reduction into dx's producer instead.
        q = 0.5 * jnp.mean(jnp.square(dx2.astype(jnp.float32)), axis=-1)
        return q.astype(out_dtype)

    tb = _pick_batch_tile(b, itemsize)
    td = _pick_feature_tile(d, tb, itemsize)
    num_k = (d + td - 1) // td
    ragged = (num_k * td != d)
    grid = (b // tb, num_k)

    half_inv_d = 0.5 / float(d)

    out = pl.pallas_call(
        functools.partial(_quadratic_cost_kernel, half_inv_d, d, td, ragged),
        out_shape=jax.ShapeDtypeStruct((b, 1), out_dtype),
        grid_spec=pltpu.PrefetchScalarGridSpec(
            num_scalar_prefetch=0,
            grid=grid,
            in_specs=[pl.BlockSpec((tb, td), lambda i, k: (i, k))],
            out_specs=pl.BlockSpec((tb, 1), lambda i, k: (i, 0)),
            scratch_shapes=[pltpu.VMEM((tb, _LANES), jnp.float32)],
        ),
        compiler_params=pltpu.CompilerParams(
            dimension_semantics=("parallel", "arbitrary"),
        ),
        cost_estimate=pl.CostEstimate(
            flops=2 * b * d,
            transcendentals=0,
            bytes_accessed=b * d * itemsize + b * jnp.dtype(out_dtype).itemsize,
        ),
    )(dx2)

    # TODO(synk): reg_quad is cast back to dx.dtype to match the PyTorch module;
    # for bf16 inputs a caller accumulating it over many ODE steps may prefer f32.
    return out.reshape(b)


# -----------------------------------------------------------------------------
# RegularizedODEfunc.forward
# -----------------------------------------------------------------------------
_NUM_REG_FNS = 2  # [quadratic_cost, jacobian_frobenius_regularization_fn]


def regularized_odefunc_forward(t, state, odefunc_apply, training=True):
    """JAX/Pallas port of RegularizedODEfunc.forward.

    state:         (x, logp, *reg_states) or (x, logp, context, *reg_states).
    odefunc_apply: callable (t, ode_input) -> (dstate, sqjacnorm), the base odefunc;
                   sqjacnorm replaces the mutable `context.sqjacnorm` attribute.
    """
    # TODO(synk): torch.enable_grad / requires_grad_ bookkeeping has no JAX
    # equivalent (autodiff is functional) and is intentionally omitted.
    if not training:
        # PyTorch eval path forwards the full state tuple to the base odefunc.
        dstate, _ = odefunc_apply(t, state)
        return dstate

    x, logp = state[0], state[1]
    if len(state) > 2 + _NUM_REG_FNS:
        context = state[2]
        ode_input = (x, logp, context)
    else:
        context = None
        ode_input = (x, logp)

    dstate, sqjacnorm = odefunc_apply(t, ode_input)

    if len(state) > 3:
        if context is None:
            dx, dlogp = dstate[0], dstate[1]
            dstate = (dx, dlogp)
        else:
            dx, dlogp, dctx = dstate[0], dstate[1], dstate[2]
            dstate = (dx, dlogp, dctx)
        reg_states = (
            quadratic_cost_pallas(dx),  # Pallas kernel (quadratic / kinetic cost)
            sqjacnorm,                  # jacobian_frobenius_regularization_fn passthrough
        )
        return dstate + reg_states
    return dstate


# -----------------------------------------------------------------------------
# Demo: a tiny elementwise "odefunc" with an exact (diagonal) Jacobian so that
# the divergence and sqjacnorm side-output are exact.  The real base odefunc is
# an external sub-module; it is plain JAX here on purpose.
# -----------------------------------------------------------------------------
def toy_odefunc_apply(t, ode_input):
    x, logp = ode_input[0], ode_input[1]
    b = x.shape[0]
    z = x + t
    dx = jnp.tanh(z)
    ddx = 1.0 - dx * dx                                            # diagonal Jacobian
    dlogp = -jnp.sum(ddx.reshape(b, -1), axis=-1, keepdims=True)   # -divergence, (B, 1)
    sqjacnorm = jnp.sum((ddx * ddx).reshape(b, -1), axis=-1)       # ||J||_F^2, (B,)
    return (dx, dlogp), sqjacnorm


if __name__ == "__main__":
    key = jax.random.PRNGKey(0)

    # --- 1) Module-level forward at the small shape implied by the module ----
    B, C, H, W = 2, 4, 16, 16
    x = jax.random.normal(key, (B, C, H, W), dtype=jnp.float32)   # NCHW
    logp = jnp.zeros((B, 1), dtype=jnp.float32)
    reg0 = jnp.zeros((B,), dtype=jnp.float32)
    reg1 = jnp.zeros((B,), dtype=jnp.float32)
    t = jnp.float32(0.1)
    state = (x, logp, reg0, reg1)   # len(state) == 4 > 3 -> regularized training path

    out = regularized_odefunc_forward(t, state, toy_odefunc_apply, training=True)
    out = jax.block_until_ready(out)
    dx, dlogp, reg_quad, reg_jacfro = out

    (dx_ref, dlogp_ref), sqjac_ref = toy_odefunc_apply(t, (x, logp))
    quad_ref = 0.5 * jnp.mean(dx_ref.reshape(B, -1) ** 2, axis=-1)

    assert dx.shape == x.shape and dx.dtype == x.dtype
    assert dlogp.shape == logp.shape
    assert reg_quad.shape == (B,) and reg_jacfro.shape == (B,)
    assert float(jnp.max(jnp.abs(dx - dx_ref))) < 1e-6
    assert float(jnp.max(jnp.abs(dlogp - dlogp_ref))) < 1e-5
    assert float(jnp.max(jnp.abs(reg_quad - quad_ref))) < 1e-6
    assert float(jnp.max(jnp.abs(reg_jacfro - sqjac_ref))) < 1e-5

    # --- 2) Exercise the Pallas reduction kernel itself (fallback disabled) ---
    def _check_quad(idx, shape, dtype, tol):
        k2 = jax.random.fold_in(key, idx)
        v = jax.random.normal(k2, shape, dtype=jnp.float32).astype(dtype)
        got = jax.block_until_ready(quadratic_cost_pallas(v, min_pallas_bytes=0))
        ref = (0.5 * jnp.mean(
            jnp.square(v.reshape(shape[0], -1).astype(jnp.float32)), axis=-1)
        ).astype(dtype)
        assert got.shape == (shape[0],) and got.dtype == dtype
        err = float(jnp.max(jnp.abs(got.astype(jnp.float32) - ref.astype(jnp.float32))))
        assert err < tol, (shape, dtype, err)

    _check_quad(1, (2, 4, 16, 16), jnp.float32, 1e-6)    # small, aligned D, grid (1,1)
    _check_quad(2, (16, 1, 28, 28), jnp.float32, 1e-6)   # ragged D=784  (in-kernel mask)
    _check_quad(3, (16, 3, 37, 11), jnp.float32, 1e-6)   # ragged D=1221 (in-kernel mask)
    _check_quad(4, (16, 8, 16, 16), jnp.bfloat16, 2e-2)  # bf16 input, f32 accumulation

    print("KERNEL_OK")
</pallas_src>

<mosaic_0001>
module attributes {stable_mosaic.version = 11 : i64} {
  func.func @_quadratic_cost_kernel(%arg0: i32, %arg1: i32, %arg2: memref<2x1024xf32, #tpu.memory_space<vmem>>, %arg3: memref<2x1xf32, #tpu.memory_space<vmem>>, %arg4: memref<2x128xf32, #tpu.memory_space<vmem>>) attributes {dimension_semantics = [#tpu.dimension_semantics<parallel>, #tpu.dimension_semantics<arbitrary>], iteration_bounds = array<i64: 1, 1>, scalar_prefetch = 0 : i64, scratch_operands = 1 : i64, tpu.core_type = #tpu.core_type<tc>, window_params = [{transform_indices = @transform_0, window_bounds = array<i64: 2, 1024>}, {transform_indices = @transform_1, window_bounds = array<i64: 2, 1>}]} {
    %c0_i32 = arith.constant 0 : i32
    %0 = arith.cmpi eq, %arg1, %c0_i32 : i32
    %1 = arith.extui %0 : i1 to i32
    %c0_i32_0 = arith.constant 0 : i32
    %2 = arith.cmpi ne, %1, %c0_i32_0 : i32
    scf.if %2 {
      %cst = arith.constant 0.000000e+00 : f32
      %32 = vector.broadcast %cst : f32 to vector<2x128xf32>
      %c0_15 = arith.constant 0 : index
      %c0_16 = arith.constant 0 : index
      %33 = vector.load %arg4[%c0_15, %c0_16] : memref<2x128xf32, #tpu.memory_space<vmem>>, vector<2x128xf32>
      tpu.vector_store %arg4[%c0_15, %c0_16], %32 {strides = array<i32>} : memref<2x128xf32, #tpu.memory_space<vmem>>, vector<2x128xf32>,
    } else {
    }
    %c0 = arith.constant 0 : index
    %c0_1 = arith.constant 0 : index
    %3 = vector.load %arg4[%c0, %c0_1] : memref<2x128xf32, #tpu.memory_space<vmem>>, vector<2x128xf32>
    %c0_2 = arith.constant 0 : index
    %c0_3 = arith.constant 0 : index
    %4 = vector.load %arg2[%c0_2, %c0_3] : memref<2x1024xf32, #tpu.memory_space<vmem>>, vector<2x128xf32>
    %5 = arith.mulf %4, %4 : vector<2x128xf32>
    %6 = arith.addf %3, %5 : vector<2x128xf32>
    %c0_4 = arith.constant 0 : index
    %c128 = arith.constant 128 : index
    %7 = vector.load %arg2[%c0_4, %c128] : memref<2x1024xf32, #tpu.memory_space<vmem>>, vector<2x128xf32>
    %8 = arith.mulf %7, %7 : vector<2x128xf32>
    %9 = arith.addf %6, %8 : vector<2x128xf32>
    %c0_5 = arith.constant 0 : index
    %c256 = arith.constant 256 : index
    %10 = vector.load %arg2[%c0_5, %c256] : memref<2x1024xf32, #tpu.memory_space<vmem>>, vector<2x128xf32>
    %11 = arith.mulf %10, %10 : vector<2x128xf32>
    %12 = arith.addf %9, %11 : vector<2x128xf32>
    %c0_6 = arith.constant 0 : index
    %c384 = arith.constant 384 : index
    %13 = vector.load %arg2[%c0_6, %c384] : memref<2x1024xf32, #tpu.memory_space<vmem>>, vector<2x128xf32>
    %14 = arith.mulf %13, %13 : vector<2x128xf32>
    %15 = arith.addf %12, %14 : vector<2x128xf32>
    %c0_7 = arith.constant 0 : index
    %c512 = arith.constant 512 : index
    %16 = vector.load %arg2[%c0_7, %c512] : memref<2x1024xf32, #tpu.memory_space<vmem>>, vector<2x128xf32>
    %17 = arith.mulf %16, %16 : vector<2x128xf32>
    %18 = arith.addf %15, %17 : vector<2x128xf32>
    %c0_8 = arith.constant 0 : index
    %c640 = arith.constant 640 : index
    %19 = vector.load %arg2[%c0_8, %c640] : memref<2x1024xf32, #tpu.memory_space<vmem>>, vector<2x128xf32>
    %20 = arith.mulf %19, %19 : vector<2x128xf32>
    %21 = arith.addf %18, %20 : vector<2x128xf32>
    %c0_9 = arith.constant 0 : index
    %c768 = arith.constant 768 : index
    %22 = vector.load %arg2[%c0_9, %c768] : memref<2x1024xf32, #tpu.memory_space<vmem>>, vector<2x128xf32>
    %23 = arith.mulf %22, %22 : vector<2x128xf32>
    %24 = arith.addf %21, %23 : vector<2x128xf32>
    %c0_10 = arith.constant 0 : index
    %c896 = arith.constant 896 : index
    %25 = vector.load %arg2[%c0_10, %c896] : memref<2x1024xf32, #tpu.memory_space<vmem>>, vector<2x128xf32>
    %26 = arith.mulf %25, %25 : vector<2x128xf32>
    %27 = arith.addf %24, %26 : vector<2x128xf32>
    %c0_11 = arith.constant 0 : index
    %c0_12 = arith.constant 0 : index
    %28 = vector.load %arg4[%c0_11, %c0_12] : memref<2x128xf32, #tpu.memory_space<vmem>>, vector<2x128xf32>
    tpu.vector_store %arg4[%c0_11, %c0_12], %27 {strides = array<i32>} : memref<2x128xf32, #tpu.memory_space<vmem>>, vector<2x128xf32>,
    %c0_i32_13 = arith.constant 0 : i32
    %29 = arith.cmpi eq, %arg1, %c0_i32_13 : i32
    %30 = arith.extui %29 : i1 to i32
    %c0_i32_14 = arith.constant 0 : i32
    %31 = arith.cmpi ne, %30, %c0_i32_14 : i32
    scf.if %31 {
      %c0_15 = arith.constant 0 : index
      %c0_16 = arith.constant 0 : index
      %32 = vector.load %arg4[%c0_15, %c0_16] : memref<2x128xf32, #tpu.memory_space<vmem>>, vector<2x128xf32>
      %cst = arith.constant dense<0.000000e+00> : vector<2xf32>
      %33 = vector.multi_reduction <add>, %32, %cst [1] : vector<2x128xf32> to vector<2xf32>
      %34 = vector.shape_cast %33 : vector<2xf32> to vector<2x1xf32>
      %cst_17 = arith.constant 4.8828125E-4 : f32
      %35 = vector.broadcast %cst_17 : f32 to vector<2x1xf32>
      %36 = arith.mulf %34, %35 : vector<2x1xf32>
      %c0_18 = arith.constant 0 : index
      %c0_19 = arith.constant 0 : index
      %37 = vector.load %arg3[%c0_18, %c0_19] : memref<2x1xf32, #tpu.memory_space<vmem>>, vector<2x1xf32>
      tpu.vector_store %arg3[%c0_18, %c0_19], %36 {strides = array<i32>} : memref<2x1xf32, #tpu.memory_space<vmem>>, vector<2x1xf32>,
    } else {
    }
    return
  }
  func.func @transform_0(%arg0: i32, %arg1: i32) -> (i32, i32) {
    %c0_i32 = arith.constant 0 : i32
    return %arg0, %arg1 : i32, i32
  }
  func.func @transform_1(%arg0: i32, %arg1: i32) -> (i32, i32) {
    %c0_i32 = arith.constant 0 : i32
    %c0_i32_0 = arith.constant 0 : i32
    return %arg0, %c0_i32 : i32, i32
  }
}

</mosaic_0001>

<llo_original>
// kernel: tpu_custom_call.1
$region0: #{tpu_custom_call.1}
  #allocation0 [shape = 'u32[]', space=smem, size = 0x4, offset = 0x4, fixed_abs, tag = 'smem constant byte address 0x4 - core index']
  #allocation1 [shape = 'u32[144,128]{1,0:T(1,128)}', space=vmem, size = 0x12000, scoped, tag = 'internal scratch']
  #allocation2 [shape = 'f32[2,128]{1,0:T(2,128)}', space=vmem, size = 0x400, scoped, tag = 'scratch operand']
  %s0 = inlined_call_operand.hbm [shape: f32[2,1024], index: 0, kind: input, shape index: {}]
  %s1 = inlined_call_operand.vmem [shape: f32[2,1], index: 1, kind: output, shape index: {}]
  %s2 = sld [smem:[#allocation0]]
  $region26: #{tpu_custom_call.1} parent=0
    _
  %s4 = ssub.s32 1, %s2
  %s5 = scalar_select 0, %s4, %s2
  $region1: #{tpu_custom_call.1} parent=0
    #allocation3 [shape = 'u8[8192]{0}', space=vmem, size = 0x2000, scoped, tag = 'input window, operand 0, single buffered']
    #allocation4 [shape = 's32[1]{0}', space=sflag, size = 0x4, scoped, tag = 'scoped memory for tpu_custom_call.1']
    %6 = vsyncpa [#allocation4], 0
    // Predicated region
    $region2: #{tpu_custom_call.1} parent=1 // pred_check
      _
    $region3: #{tpu_custom_call.1} parent=1 // pred_check_branch
      %8 = sbr.rel (0) target = $region5
    $region4: #{tpu_custom_call.1} parent=1 // pred_region
      %s10 = ssub.s32 256, 256
      %11 = vsyncadd [#allocation4], %s10
      %s13 = sshll.u32 [#allocation3], 4
      %s14 = int_to_ptr.vmem [resolvable:$true] %s13
      %16 = dma.hbm_to_vmem [thread:$0]  %s0, 256, %s14, [#allocation4]
    $region5: #{tpu_custom_call.1} parent=1 // pred_fallthru
      _
    // Predicated region
    $region6: #{tpu_custom_call.1} parent=1 // pred_check
      _
    $region7: #{tpu_custom_call.1} parent=1 // pred_check_branch
      %18 = sbr.rel (0) target = $region9
    $region8: #{tpu_custom_call.1} parent=1 // pred_region
      %19 = dma.done [#allocation4], 256
    $region9: #{tpu_custom_call.1} parent=1 // pred_fallthru
      _
    %p20 = scmp.eq.s32.totalorder 0, 0
    // Predicated region
    $region10: #{tpu_custom_call.1} parent=1 // pred_check
      %p21 = pneg %p20
    $region11: #{tpu_custom_call.1} parent=1 // pred_check_branch
      %23 = sbr.rel (%p21) target = $region13
    $region12: #{tpu_custom_call.1} parent=1 // pred_region
      %24 = vst [vmem:[#allocation2] sm:$0x3] 0.0
    $region13: #{tpu_custom_call.1} parent=1 // pred_fallthru
      _
    %v25 = vld [vmem:[#allocation2] sm:$0x3]
    %v26 = vld [vmem:[#allocation3] sm:$0x3]
    %v27 = vmul.f32 %v26, %v26
    %v28 = vadd.f32 %v25, %v27
    %v29 = vld [vmem:[#allocation3 + $0x2] sm:$0x3]
    %v30 = vmul.f32 %v29, %v29
    %v31 = vadd.f32 %v28, %v30
    %v32 = vld [vmem:[#allocation3 + $0x4] sm:$0x3]
    %v33 = vmul.f32 %v32, %v32
    %v34 = vadd.f32 %v31, %v33
    %v35 = vld [vmem:[#allocation3 + $0x6] sm:$0x3]
    %v36 = vmul.f32 %v35, %v35
    %v37 = vadd.f32 %v34, %v36
    %v38 = vld [vmem:[#allocation3 + $0x8] sm:$0x3]
    %v39 = vmul.f32 %v38, %v38
    %v40 = vadd.f32 %v37, %v39
    %v41 = vld [vmem:[#allocation3 + $0xa] sm:$0x3]
    %v42 = vmul.f32 %v41, %v41
    %v43 = vadd.f32 %v40, %v42
    %v44 = vld [vmem:[#allocation3 + $0xc] sm:$0x3]
    %v45 = vmul.f32 %v44, %v44
    %v46 = vadd.f32 %v43, %v45
    %v47 = vld [vmem:[#allocation3 + $0xe] sm:$0x3]
    %v48 = vmul.f32 %v47, %v47
    %v49 = vadd.f32 %v46, %v48
    %50 = vst [vmem:[#allocation2] sm:$0x3] %v49
    // Predicated region
    $region14: #{tpu_custom_call.1} parent=1 // pred_check
      %p51 = pneg %p20
    $region15: #{tpu_custom_call.1} parent=1 // pred_check_branch
      %53 = sbr.rel (%p51) target = $region17
    $region16: #{tpu_custom_call.1} parent=1 // pred_region
      %v54 = vld [vmem:[#allocation2] sm:$0x3]
      %vm55 = vcmask 1041408
      %v56 = vsel %vm55, %v54, 0.0
      %57 = vadd.xlane.f32.xlu0 %v56
      %v58 = vpop.xlane.xlu0 %57
      %v59 = vmul.f32 %v58, 0.00048828125
      %vm60 = vcmask 1024
      %61 = vst.msk [vmem:[%s1] sm:$0x3] %vm60, %v59
    $region17: #{tpu_custom_call.1} parent=1 // pred_fallthru
      _
    // Predicated region
    $region18: #{tpu_custom_call.1} parent=1 // pred_check
      _
    $region19: #{tpu_custom_call.1} parent=1 // pred_check_branch
      %63 = sbr.rel (0) target = $region21
    $region20: #{tpu_custom_call.1} parent=1 // pred_region
      _
    $region21: #{tpu_custom_call.1} parent=1 // pred_fallthru
      _
    // Predicated region
    $region22: #{tpu_custom_call.1} parent=1 // pred_check
      _
    $region23: #{tpu_custom_call.1} parent=1 // pred_check_branch
      %65 = sbr.rel (0) target = $region25
    $region24: #{tpu_custom_call.1} parent=1 // pred_region
      _
    $region25: #{tpu_custom_call.1} parent=1 // pred_fallthru
      _
    %66 = vsyncpa [#allocation4], 1

</llo_original>
